<compile_context>
chip_gen: v7x
topology: tpu7x:2x2x1
jax: 0.10.0
libtpu: 0.0.40
codegen_flags: <defaults>
</compile_context>

<pallas_src>
import functools

import jax
import jax.numpy as jnp
import numpy as np
from jax import lax
from jax.experimental import pallas as pl
from jax.experimental.pallas import tpu as pltpu

SIGMA = 0.85            # sig_loss sigma
EPS = 1e-3              # eps in both losses
STRIDES = (1, 2, 4, 6)  # [depth] + [depth[::2*i, ::2*i] for i in 1..3]
MAX_OFF = 2 * max(STRIDES)   # largest gradient offset in full-res pixels (12)
HALO = 16               # >= MAX_OFF, multiple of 8 (sublane)


def _round_up(x, m):
    return ((x + m - 1) // m) * m


def _stride_mask(idx_i32, s):
    """float32 {0,1} mask of positions where idx % s == 0 (idx >= 0).

    Power-of-two strides use a bitwise AND; stride 6 uses an exact float
    round-trip (integer vector remainder does not lower well on the VPU).
    """
    if s == 1:
        return None
    if s & (s - 1) == 0:
        return (jnp.bitwise_and(idx_i32, s - 1) == 0).astype(jnp.float32)
    f = idx_i32.astype(jnp.float32)
    q = jnp.floor(f * (1.0 / s) + 0.5)
    return (q * float(s) == f).astype(jnp.float32)


def _combine_masks(a, b):
    if a is None:
        return b
    if b is None:
        return a
    return a * b


def _shift_fwd(x, d, axis):
    """y[..., i, ...] = x[..., (i + d) mod n, ...]; callers mask the wrap."""
    n = x.shape[axis]
    return pltpu.roll(x, n - d, axis)


def _masked_logdiff(pred, gt, max_depth):
    """(valid-masked log((p+eps)/(g+eps)), valid-as-f32). NaN-safe via select."""
    gt = jnp.where(gt > max_depth, 0.0, gt)
    valid_b = gt > 0.0
    log_diff = jnp.where(valid_b, jnp.log((pred + EPS) / (gt + EPS)), 0.0)
    return log_diff, valid_b.astype(jnp.float32)


def _depth_stats_kernel(pred_ref, gt_ref, pred_halo_ref, gt_halo_ref, out_ref,
                        *, max_depth, n_rows_total, guard_cols, cross_tile):
    """Per-row-tile masked reductions for DepthLoss.

    pred_ref, gt_ref            : VMEM (TH, W)  f32   current row tile
    pred_halo_ref, gt_halo_ref  : VMEM (16, W)  f32   first 16 rows of next tile
    out_ref                     : VMEM (1, 8, 128) f32 partial stats, packed in
                                  sublane 0 lanes 0..9:
                                  [N_1,N_2,N_4,N_6, G_1,G_2,G_4,G_6, sum_g, sum_g2]
    """
    th, w = pred_ref.shape
    row0 = pl.program_id(0) * th                       # global row of tile row 0

    log_diff, valid = _masked_logdiff(pred_ref[...], gt_ref[...], max_depth)

    lrow = lax.broadcasted_iota(jnp.int32, (th, w), 0)     # local row index
    col = lax.broadcasted_iota(jnp.int32, (th, w), 1)      # column (not tiled)
    grow = lrow + row0                                     # global row index

    if cross_tile:
        halo_ld, halo_v = _masked_logdiff(pred_halo_ref[...], gt_halo_ref[...],
                                          max_depth)
        # tail = last HALO rows of this tile ++ first HALO rows of the next
        # tile: vertical pairs whose partner row lives in the next tile.
        tail_ld = jnp.concatenate([log_diff[th - HALO:, :], halo_ld], axis=0)
        tail_v = jnp.concatenate([valid[th - HALO:, :], halo_v], axis=0)
        tail_lrow = lax.broadcasted_iota(jnp.int32, (2 * HALO, w), 0)
        tail_col = lax.broadcasted_iota(jnp.int32, (2 * HALO, w), 1)
        tail_grow = tail_lrow + (row0 + th - HALO)

    n_list = []
    g_list = []
    for s in STRIDES:
        d = 2 * s
        rc = _combine_masks(_stride_mask(grow, s), _stride_mask(col, s))

        # N_s: valid-pixel count of the stride-s subsampled map.
        nv = valid if rc is None else valid * rc
        n_list.append(jnp.sum(nv))

        # Horizontal: |ld[r,c] - ld[r,c+d]|, both endpoints valid (lane roll).
        # The lane wrap is already dead whenever the column zero-padding is at
        # least MAX_OFF wide (guard_cols statically elides the select then).
        ld_r = _shift_fwd(log_diff, d, 1)
        v_r = _shift_fwd(valid, d, 1)
        h_pair = valid * v_r
        if guard_cols:
            h_pair = jnp.where(col < w - d, h_pair, 0.0)
        h_grad = jnp.abs(log_diff - ld_r) * h_pair

        # Vertical (within-tile pairs): |ld[r,c] - ld[r+d,c]| (sublane roll).
        ld_dn = _shift_fwd(log_diff, d, 0)
        v_dn = _shift_fwd(valid, d, 0)
        v_pair = jnp.where(lrow < th - d, valid * v_dn, 0.0)
        v_grad = jnp.abs(log_diff - ld_dn) * v_pair

        hv = h_grad + v_grad          # single combined reduction per scale
        if rc is not None:
            hv = hv * rc
        g_s = jnp.sum(hv)

        if cross_tile:
            # Vertical pairs crossing into the next row tile (via the halo).
            t_ld_dn = _shift_fwd(tail_ld, d, 0)
            t_v_dn = _shift_fwd(tail_v, d, 0)
            pair_ok = jnp.logical_and(
                jnp.logical_and(tail_lrow >= HALO - d, tail_lrow < HALO),
                (tail_grow + d) < n_rows_total)        # also kills wrapped halo
            t_pair = jnp.where(pair_ok, tail_v * t_v_dn, 0.0)
            t_grad = jnp.abs(tail_ld - t_ld_dn) * t_pair
            t_rc = _combine_masks(_stride_mask(tail_grow, s),
                                  _stride_mask(tail_col, s))
            if t_rc is not None:
                t_grad = t_grad * t_rc
            g_s = g_s + jnp.sum(t_grad)
        g_list.append(g_s)

    # sig_loss partial sums (full resolution only; log_diff is valid-masked).
    sum_g = jnp.sum(log_diff)
    sum_g2 = jnp.sum(log_diff * log_diff)

    stat_vals = list(n_list) + list(g_list) + [sum_g, sum_g2]

    lane = lax.broadcasted_iota(jnp.int32, (1, 8, 128), 2)
    sub = lax.broadcasted_iota(jnp.int32, (1, 8, 128), 1)
    acc = jnp.zeros((1, 8, 128), jnp.float32)
    for k, val in enumerate(stat_vals):
        acc = jnp.where(jnp.logical_and(sub == 0, lane == k), val, acc)
    out_ref[...] = acc


def depth_loss(pred, target, weight_sig=10.0, weight_grad=0.5, max_depth=10.0,
               tile_rows=None):
    """JAX/Pallas equivalent of DepthLoss.forward(pred, target)."""
    assert pred.ndim == 2 and pred.shape == target.shape
    H, W = pred.shape

    w_pad = _round_up(max(W, 128), 128)
    if tile_rows is None:
        tile_rows = (2 << 20) // (w_pad * 4)      # ~2 MiB per f32 input block
    th = max(HALO, min(512, (int(tile_rows) // HALO) * HALO))
    th = min(th, _round_up(H, HALO))
    th = max(HALO, (th // HALO) * HALO)
    h_pad = _round_up(H, th)
    num_tiles = h_pad // th
    hb = th // HALO

    pred = pred.astype(jnp.float32)
    target = target.astype(jnp.float32)
    if (h_pad, w_pad) != (H, W):
        # Padding has target == 0 (invalid) -> contributes nothing to any sum.
        pred_p = jnp.zeros((h_pad, w_pad), jnp.float32).at[:H, :W].set(pred)
        gt_p = jnp.zeros((h_pad, w_pad), jnp.float32).at[:H, :W].set(target)
    else:
        pred_p, gt_p = pred, target

    kernel = functools.partial(
        _depth_stats_kernel,
        max_depth=float(max_depth),
        n_rows_total=h_pad,
        guard_cols=(w_pad - W) < MAX_OFF,   # column pad < 12 -> need wrap guard
        cross_tile=num_tiles > 1,
    )

    stats = pl.pallas_call(
        kernel,
        out_shape=jax.ShapeDtypeStruct((num_tiles, 8, 128), jnp.float32),
        grid=(num_tiles,),
        in_specs=[
            pl.BlockSpec((th, w_pad), lambda i: (i, 0)),
            pl.BlockSpec((th, w_pad), lambda i: (i, 0)),
            # 16-row halo = head of the next tile (wraps to tile 0 on the last
            # step; those pairs are masked by the global partner-row check).
            pl.BlockSpec((HALO, w_pad),
                         lambda i: (((i + 1) % num_tiles) * hb, 0)),
            pl.BlockSpec((HALO, w_pad),
                         lambda i: (((i + 1) % num_tiles) * hb, 0)),
        ],
        out_specs=pl.BlockSpec((1, 8, 128), lambda i: (i, 0, 0)),
        compiler_params=pltpu.CompilerParams(
            dimension_semantics=("parallel",),
            vmem_limit_bytes=48 * 1024 * 1024,
        ),
    )(pred_p, gt_p, pred_p, gt_p)

    totals = jnp.sum(stats, axis=(0, 1))           # (128,) lane-packed stats
    ns = len(STRIDES)
    n = totals[0:ns]                               # per-scale valid counts
    g = totals[ns:2 * ns]                          # per-scale gradient sums
    sum_g = totals[2 * ns]
    sum_g2 = totals[2 * ns + 1]

    n0 = n[0]
    sig_arg = sum_g2 / n0 - SIGMA * (sum_g / n0) ** 2
    sig = jnp.sqrt(jnp.maximum(sig_arg, 0.0))      # clamp: fp-rounding insurance
    grad = jnp.sum(jnp.where(n > 0.0, g / jnp.maximum(n, 1.0), 0.0))
    return weight_sig * sig + weight_grad * grad


def _reference(pred, target, weight_sig=10.0, weight_grad=0.5, max_depth=10.0):
    """Pure-JAX transcription of the PyTorch reference (for checking)."""
    target = jnp.where(target > max_depth, 0.0, target)

    vf = (target > 0.0).astype(jnp.float32)
    g = jnp.log(pred + EPS) - jnp.log(target + EPS)
    n = jnp.sum(vf)
    mean_g = jnp.sum(g * vf) / n
    mean_g2 = jnp.sum(g * g * vf) / n
    sig = jnp.sqrt(mean_g2 - SIGMA * mean_g ** 2)

    total = 0.0
    for s in STRIDES:
        pr = pred[::s, ::s]
        gt = target[::s, ::s]
        v = (gt > 0.0).astype(jnp.float32)
        ld = (jnp.log(pr + EPS) - jnp.log(gt + EPS)) * v
        vg = jnp.abs(ld[:-2, :] - ld[2:, :]) * v[:-2, :] * v[2:, :]
        hg = jnp.abs(ld[:, :-2] - ld[:, 2:]) * v[:, :-2] * v[:, 2:]
        total = total + (jnp.sum(vg) + jnp.sum(hg)) / jnp.sum(v)

    return weight_sig * sig + weight_grad * total


if __name__ == "__main__":
    key = jax.random.PRNGKey(0)
    k1, k2, k3, k4 = jax.random.split(key, 4)

    # Case 1: tiny map, single row tile (cross-tile path statically elided).
    pred1 = jax.random.uniform(k1, (16, 16), jnp.float32, minval=0.05, maxval=9.5)
    tgt1 = jax.random.uniform(k2, (16, 16), jnp.float32, minval=0.0, maxval=12.0)
    out1 = jax.block_until_ready(depth_loss(pred1, tgt1))
    np.testing.assert_allclose(np.asarray(out1), np.asarray(_reference(pred1, tgt1)),
                               rtol=1e-4, atol=1e-4)

    # Case 2: multiple row tiles (tile_rows=16 -> 3 tiles) exercising the halo
    # cross-tile path plus row/column padding.
    pred2 = jax.random.uniform(k3, (40, 52), jnp.float32, minval=0.05, maxval=9.5)
    tgt2 = jax.random.uniform(k4, (40, 52), jnp.float32, minval=0.0, maxval=12.0)
    out2 = jax.block_until_ready(depth_loss(pred2, tgt2, tile_rows=16))
    np.testing.assert_allclose(np.asarray(out2), np.asarray(_reference(pred2, tgt2)),
                               rtol=1e-4, atol=1e-4)

    print("KERNEL_OK")
</pallas_src>

<mosaic_0001>
module attributes {stable_mosaic.version = 11 : i64} {
  func.func @_depth_stats_kernel(%arg0: i32, %arg1: memref<16x128xf32, #tpu.memory_space<vmem>>, %arg2: memref<16x128xf32, #tpu.memory_space<vmem>>, %arg3: memref<16x128xf32, #tpu.memory_space<vmem>>, %arg4: memref<16x128xf32, #tpu.memory_space<vmem>>, %arg5: memref<1x8x128xf32, #tpu.memory_space<vmem>>) attributes {dimension_semantics = [#tpu.dimension_semantics<parallel>], iteration_bounds = array<i64: 1>, scalar_prefetch = 0 : i64, scratch_operands = 0 : i64, tpu.core_type = #tpu.core_type<tc>, window_params = [{transform_indices = @transform_0, window_bounds = array<i64: 16, 128>}, {transform_indices = @transform_1, window_bounds = array<i64: 16, 128>}, {transform_indices = @transform_2, window_bounds = array<i64: 16, 128>}, {transform_indices = @transform_3, window_bounds = array<i64: 16, 128>}, {transform_indices = @transform_4, window_bounds = array<i64: 1, 8, 128>}]} {
    %c16_i32 = arith.constant 16 : i32
    %0 = arith.muli %arg0, %c16_i32 : i32
    %c0 = arith.constant 0 : index
    %c0_0 = arith.constant 0 : index
    %1 = vector.load %arg1[%c0, %c0_0] : memref<16x128xf32, #tpu.memory_space<vmem>>, vector<16x128xf32>
    %c0_1 = arith.constant 0 : index
    %c0_2 = arith.constant 0 : index
    %2 = vector.load %arg2[%c0_1, %c0_2] : memref<16x128xf32, #tpu.memory_space<vmem>>, vector<16x128xf32>
    %cst = arith.constant 1.000000e+01 : f32
    %3 = vector.broadcast %cst : f32 to vector<16x128xf32>
    %4 = arith.cmpf ogt, %2, %3 : vector<16x128xf32>
    %cst_3 = arith.constant 0.000000e+00 : f32
    %5 = vector.broadcast %cst_3 : f32 to vector<16x128xf32>
    %6 = arith.select %4, %5, %2 : vector<16x128xi1>, vector<16x128xf32>
    %cst_4 = arith.constant 0.000000e+00 : f32
    %7 = vector.broadcast %cst_4 : f32 to vector<16x128xf32>
    %8 = arith.cmpf ogt, %6, %7 : vector<16x128xf32>
    %cst_5 = arith.constant 1.000000e-03 : f32
    %9 = vector.broadcast %cst_5 : f32 to vector<16x128xf32>
    %10 = arith.addf %1, %9 : vector<16x128xf32>
    %cst_6 = arith.constant 1.000000e-03 : f32
    %11 = vector.broadcast %cst_6 : f32 to vector<16x128xf32>
    %12 = arith.addf %6, %11 : vector<16x128xf32>
    %13 = arith.divf %10, %12 : vector<16x128xf32>
    %14 = math.log %13 : vector<16x128xf32>
    %cst_7 = arith.constant 0.000000e+00 : f32
    %15 = vector.broadcast %cst_7 : f32 to vector<16x128xf32>
    %16 = arith.select %8, %14, %15 : vector<16x128xi1>, vector<16x128xf32>
    %17 = arith.extui %8 : vector<16x128xi1> to vector<16x128xi32>
    %18 = arith.sitofp %17 : vector<16x128xi32> to vector<16x128xf32>
    %19 = tpu.iota {dimensions = array<i32: 0>} : vector<16x128xi32>
    %20 = tpu.iota {dimensions = array<i32: 1>} : vector<16x128xi32>
    %21 = vector.broadcast %0 : i32 to vector<16x128xi32>
    %22 = arith.addi %19, %21 : vector<16x128xi32>
    %23 = vector.shape_cast %18 : vector<16x128xf32> to vector<1x16x128xf32>
    %cst_8 = arith.constant dense<0.000000e+00> : vector<1xf32>
    %24 = vector.multi_reduction <add>, %23, %cst_8 [1, 2] : vector<1x16x128xf32> to vector<1xf32>
    %25 = vector.shape_cast %24 : vector<1xf32> to vector<1x1x1xf32>
    %26 = vector.extract %25[0, 0, 0] : f32 from vector<1x1x1xf32>
    %c126_i32 = arith.constant 126 : i32
    %27 = tpu.dynamic_rotate %16 by %c126_i32 dim 1 : vector<16x128xf32>, i32 -> vector<16x128xf32>
    %c126_i32_9 = arith.constant 126 : i32
    %28 = tpu.dynamic_rotate %18 by %c126_i32_9 dim 1 : vector<16x128xf32>, i32 -> vector<16x128xf32>
    %29 = arith.mulf %18, %28 : vector<16x128xf32>
    %30 = arith.subf %16, %27 : vector<16x128xf32>
    %31 = math.absf %30 : vector<16x128xf32>
    %32 = arith.mulf %31, %29 : vector<16x128xf32>
    %c14_i32 = arith.constant 14 : i32
    %33 = tpu.dynamic_rotate %16 by %c14_i32 dim 0 : vector<16x128xf32>, i32 -> vector<16x128xf32>
    %c14_i32_10 = arith.constant 14 : i32
    %34 = tpu.dynamic_rotate %18 by %c14_i32_10 dim 0 : vector<16x128xf32>, i32 -> vector<16x128xf32>
    %c14_i32_11 = arith.constant 14 : i32
    %35 = vector.broadcast %c14_i32_11 : i32 to vector<16x128xi32>
    %36 = arith.cmpi slt, %19, %35 : vector<16x128xi32>
    %37 = arith.mulf %18, %34 : vector<16x128xf32>
    %cst_12 = arith.constant 0.000000e+00 : f32
    %38 = vector.broadcast %cst_12 : f32 to vector<16x128xf32>
    %39 = arith.select %36, %37, %38 : vector<16x128xi1>, vector<16x128xf32>
    %40 = arith.subf %16, %33 : vector<16x128xf32>
    %41 = math.absf %40 : vector<16x128xf32>
    %42 = arith.mulf %41, %39 : vector<16x128xf32>
    %43 = arith.addf %32, %42 : vector<16x128xf32>
    %44 = vector.shape_cast %43 : vector<16x128xf32> to vector<1x16x128xf32>
    %cst_13 = arith.constant dense<0.000000e+00> : vector<1xf32>
    %45 = vector.multi_reduction <add>, %44, %cst_13 [1, 2] : vector<1x16x128xf32> to vector<1xf32>
    %46 = vector.shape_cast %45 : vector<1xf32> to vector<1x1x1xf32>
    %47 = vector.extract %46[0, 0, 0] : f32 from vector<1x1x1xf32>
    %c1_i32 = arith.constant 1 : i32
    %48 = vector.broadcast %c1_i32 : i32 to vector<16x128xi32>
    %49 = arith.andi %22, %48 : vector<16x128xi32>
    %c0_i32 = arith.constant 0 : i32
    %50 = vector.broadcast %c0_i32 : i32 to vector<16x128xi32>
    %51 = arith.cmpi eq, %49, %50 : vector<16x128xi32>
    %52 = arith.extui %51 : vector<16x128xi1> to vector<16x128xi32>
    %53 = arith.sitofp %52 : vector<16x128xi32> to vector<16x128xf32>
    %c1_i32_14 = arith.constant 1 : i32
    %54 = vector.broadcast %c1_i32_14 : i32 to vector<16x128xi32>
    %55 = arith.andi %20, %54 : vector<16x128xi32>
    %c0_i32_15 = arith.constant 0 : i32
    %56 = vector.broadcast %c0_i32_15 : i32 to vector<16x128xi32>
    %57 = arith.cmpi eq, %55, %56 : vector<16x128xi32>
    %58 = arith.extui %57 : vector<16x128xi1> to vector<16x128xi32>
    %59 = arith.sitofp %58 : vector<16x128xi32> to vector<16x128xf32>
    %60 = arith.mulf %53, %59 : vector<16x128xf32>
    %61 = arith.mulf %18, %60 : vector<16x128xf32>
    %62 = vector.shape_cast %61 : vector<16x128xf32> to vector<1x16x128xf32>
    %cst_16 = arith.constant dense<0.000000e+00> : vector<1xf32>
    %63 = vector.multi_reduction <add>, %62, %cst_16 [1, 2] : vector<1x16x128xf32> to vector<1xf32>
    %64 = vector.shape_cast %63 : vector<1xf32> to vector<1x1x1xf32>
    %65 = vector.extract %64[0, 0, 0] : f32 from vector<1x1x1xf32>
    %c124_i32 = arith.constant 124 : i32
    %66 = tpu.dynamic_rotate %16 by %c124_i32 dim 1 : vector<16x128xf32>, i32 -> vector<16x128xf32>
    %c124_i32_17 = arith.constant 124 : i32
    %67 = tpu.dynamic_rotate %18 by %c124_i32_17 dim 1 : vector<16x128xf32>, i32 -> vector<16x128xf32>
    %68 = arith.mulf %18, %67 : vector<16x128xf32>
    %69 = arith.subf %16, %66 : vector<16x128xf32>
    %70 = math.absf %69 : vector<16x128xf32>
    %71 = arith.mulf %70, %68 : vector<16x128xf32>
    %c12_i32 = arith.constant 12 : i32
    %72 = tpu.dynamic_rotate %16 by %c12_i32 dim 0 : vector<16x128xf32>, i32 -> vector<16x128xf32>
    %c12_i32_18 = arith.constant 12 : i32
    %73 = tpu.dynamic_rotate %18 by %c12_i32_18 dim 0 : vector<16x128xf32>, i32 -> vector<16x128xf32>
    %c12_i32_19 = arith.constant 12 : i32
    %74 = vector.broadcast %c12_i32_19 : i32 to vector<16x128xi32>
    %75 = arith.cmpi slt, %19, %74 : vector<16x128xi32>
    %76 = arith.mulf %18, %73 : vector<16x128xf32>
    %cst_20 = arith.constant 0.000000e+00 : f32
    %77 = vector.broadcast %cst_20 : f32 to vector<16x128xf32>
    %78 = arith.select %75, %76, %77 : vector<16x128xi1>, vector<16x128xf32>
    %79 = arith.subf %16, %72 : vector<16x128xf32>
    %80 = math.absf %79 : vector<16x128xf32>
    %81 = arith.mulf %80, %78 : vector<16x128xf32>
    %82 = arith.addf %71, %81 : vector<16x128xf32>
    %83 = arith.mulf %82, %60 : vector<16x128xf32>
    %84 = vector.shape_cast %83 : vector<16x128xf32> to vector<1x16x128xf32>
    %cst_21 = arith.constant dense<0.000000e+00> : vector<1xf32>
    %85 = vector.multi_reduction <add>, %84, %cst_21 [1, 2] : vector<1x16x128xf32> to vector<1xf32>
    %86 = vector.shape_cast %85 : vector<1xf32> to vector<1x1x1xf32>
    %87 = vector.extract %86[0, 0, 0] : f32 from vector<1x1x1xf32>
    %c3_i32 = arith.constant 3 : i32
    %88 = vector.broadcast %c3_i32 : i32 to vector<16x128xi32>
    %89 = arith.andi %22, %88 : vector<16x128xi32>
    %c0_i32_22 = arith.constant 0 : i32
    %90 = vector.broadcast %c0_i32_22 : i32 to vector<16x128xi32>
    %91 = arith.cmpi eq, %89, %90 : vector<16x128xi32>
    %92 = arith.extui %91 : vector<16x128xi1> to vector<16x128xi32>
    %93 = arith.sitofp %92 : vector<16x128xi32> to vector<16x128xf32>
    %c3_i32_23 = arith.constant 3 : i32
    %94 = vector.broadcast %c3_i32_23 : i32 to vector<16x128xi32>
    %95 = arith.andi %20, %94 : vector<16x128xi32>
    %c0_i32_24 = arith.constant 0 : i32
    %96 = vector.broadcast %c0_i32_24 : i32 to vector<16x128xi32>
    %97 = arith.cmpi eq, %95, %96 : vector<16x128xi32>
    %98 = arith.extui %97 : vector<16x128xi1> to vector<16x128xi32>
    %99 = arith.sitofp %98 : vector<16x128xi32> to vector<16x128xf32>
    %100 = arith.mulf %93, %99 : vector<16x128xf32>
    %101 = arith.mulf %18, %100 : vector<16x128xf32>
    %102 = vector.shape_cast %101 : vector<16x128xf32> to vector<1x16x128xf32>
    %cst_25 = arith.constant dense<0.000000e+00> : vector<1xf32>
    %103 = vector.multi_reduction <add>, %102, %cst_25 [1, 2] : vector<1x16x128xf32> to vector<1xf32>
    %104 = vector.shape_cast %103 : vector<1xf32> to vector<1x1x1xf32>
    %105 = vector.extract %104[0, 0, 0] : f32 from vector<1x1x1xf32>
    %c120_i32 = arith.constant 120 : i32
    %106 = tpu.dynamic_rotate %16 by %c120_i32 dim 1 : vector<16x128xf32>, i32 -> vector<16x128xf32>
    %c120_i32_26 = arith.constant 120 : i32
    %107 = tpu.dynamic_rotate %18 by %c120_i32_26 dim 1 : vector<16x128xf32>, i32 -> vector<16x128xf32>
    %108 = arith.mulf %18, %107 : vector<16x128xf32>
    %109 = arith.subf %16, %106 : vector<16x128xf32>
    %110 = math.absf %109 : vector<16x128xf32>
    %111 = arith.mulf %110, %108 : vector<16x128xf32>
    %c8_i32 = arith.constant 8 : i32
    %112 = tpu.dynamic_rotate %16 by %c8_i32 dim 0 : vector<16x128xf32>, i32 -> vector<16x128xf32>
    %c8_i32_27 = arith.constant 8 : i32
    %113 = tpu.dynamic_rotate %18 by %c8_i32_27 dim 0 : vector<16x128xf32>, i32 -> vector<16x128xf32>
    %c8_i32_28 = arith.constant 8 : i32
    %114 = vector.broadcast %c8_i32_28 : i32 to vector<16x128xi32>
    %115 = arith.cmpi slt, %19, %114 : vector<16x128xi32>
    %116 = arith.mulf %18, %113 : vector<16x128xf32>
    %cst_29 = arith.constant 0.000000e+00 : f32
    %117 = vector.broadcast %cst_29 : f32 to vector<16x128xf32>
    %118 = arith.select %115, %116, %117 : vector<16x128xi1>, vector<16x128xf32>
    %119 = arith.subf %16, %112 : vector<16x128xf32>
    %120 = math.absf %119 : vector<16x128xf32>
    %121 = arith.mulf %120, %118 : vector<16x128xf32>
    %122 = arith.addf %111, %121 : vector<16x128xf32>
    %123 = arith.mulf %122, %100 : vector<16x128xf32>
    %124 = vector.shape_cast %123 : vector<16x128xf32> to vector<1x16x128xf32>
    %cst_30 = arith.constant dense<0.000000e+00> : vector<1xf32>
    %125 = vector.multi_reduction <add>, %124, %cst_30 [1, 2] : vector<1x16x128xf32> to vector<1xf32>
    %126 = vector.shape_cast %125 : vector<1xf32> to vector<1x1x1xf32>
    %127 = vector.extract %126[0, 0, 0] : f32 from vector<1x1x1xf32>
    %128 = arith.sitofp %22 : vector<16x128xi32> to vector<16x128xf32>
    %cst_31 = arith.constant 0.166666672 : f32
    %129 = vector.broadcast %cst_31 : f32 to vector<16x128xf32>
    %130 = arith.mulf %128, %129 : vector<16x128xf32>
    %cst_32 = arith.constant 5.000000e-01 : f32
    %131 = vector.broadcast %cst_32 : f32 to vector<16x128xf32>
    %132 = arith.addf %130, %131 : vector<16x128xf32>
    %133 = math.floor %132 : vector<16x128xf32>
    %cst_33 = arith.constant 6.000000e+00 : f32
    %134 = vector.broadcast %cst_33 : f32 to vector<16x128xf32>
    %135 = arith.mulf %133, %134 : vector<16x128xf32>
    %136 = arith.cmpf oeq, %135, %128 : vector<16x128xf32>
    %137 = arith.extui %136 : vector<16x128xi1> to vector<16x128xi32>
    %138 = arith.sitofp %137 : vector<16x128xi32> to vector<16x128xf32>
    %139 = arith.sitofp %20 : vector<16x128xi32> to vector<16x128xf32>
    %cst_34 = arith.constant 0.166666672 : f32
    %140 = vector.broadcast %cst_34 : f32 to vector<16x128xf32>
    %141 = arith.mulf %139, %140 : vector<16x128xf32>
    %cst_35 = arith.constant 5.000000e-01 : f32
    %142 = vector.broadcast %cst_35 : f32 to vector<16x128xf32>
    %143 = arith.addf %141, %142 : vector<16x128xf32>
    %144 = math.floor %143 : vector<16x128xf32>
    %cst_36 = arith.constant 6.000000e+00 : f32
    %145 = vector.broadcast %cst_36 : f32 to vector<16x128xf32>
    %146 = arith.mulf %144, %145 : vector<16x128xf32>
    %147 = arith.cmpf oeq, %146, %139 : vector<16x128xf32>
    %148 = arith.extui %147 : vector<16x128xi1> to vector<16x128xi32>
    %149 = arith.sitofp %148 : vector<16x128xi32> to vector<16x128xf32>
    %150 = arith.mulf %138, %149 : vector<16x128xf32>
    %151 = arith.mulf %18, %150 : vector<16x128xf32>
    %152 = vector.shape_cast %151 : vector<16x128xf32> to vector<1x16x128xf32>
    %cst_37 = arith.constant dense<0.000000e+00> : vector<1xf32>
    %153 = vector.multi_reduction <add>, %152, %cst_37 [1, 2] : vector<1x16x128xf32> to vector<1xf32>
    %154 = vector.shape_cast %153 : vector<1xf32> to vector<1x1x1xf32>
    %155 = vector.extract %154[0, 0, 0] : f32 from vector<1x1x1xf32>
    %c116_i32 = arith.constant 116 : i32
    %156 = tpu.dynamic_rotate %16 by %c116_i32 dim 1 : vector<16x128xf32>, i32 -> vector<16x128xf32>
    %c116_i32_38 = arith.constant 116 : i32
    %157 = tpu.dynamic_rotate %18 by %c116_i32_38 dim 1 : vector<16x128xf32>, i32 -> vector<16x128xf32>
    %158 = arith.mulf %18, %157 : vector<16x128xf32>
    %159 = arith.subf %16, %156 : vector<16x128xf32>
    %160 = math.absf %159 : vector<16x128xf32>
    %161 = arith.mulf %160, %158 : vector<16x128xf32>
    %c4_i32 = arith.constant 4 : i32
    %162 = tpu.dynamic_rotate %16 by %c4_i32 dim 0 : vector<16x128xf32>, i32 -> vector<16x128xf32>
    %c4_i32_39 = arith.constant 4 : i32
    %163 = tpu.dynamic_rotate %18 by %c4_i32_39 dim 0 : vector<16x128xf32>, i32 -> vector<16x128xf32>
    %c4_i32_40 = arith.constant 4 : i32
    %164 = vector.broadcast %c4_i32_40 : i32 to vector<16x128xi32>
    %165 = arith.cmpi slt, %19, %164 : vector<16x128xi32>
    %166 = arith.mulf %18, %163 : vector<16x128xf32>
    %cst_41 = arith.constant 0.000000e+00 : f32
    %167 = vector.broadcast %cst_41 : f32 to vector<16x128xf32>
    %168 = arith.select %165, %166, %167 : vector<16x128xi1>, vector<16x128xf32>
    %169 = arith.subf %16, %162 : vector<16x128xf32>
    %170 = math.absf %169 : vector<16x128xf32>
    %171 = arith.mulf %170, %168 : vector<16x128xf32>
    %172 = arith.addf %161, %171 : vector<16x128xf32>
    %173 = arith.mulf %172, %150 : vector<16x128xf32>
    %174 = vector.shape_cast %173 : vector<16x128xf32> to vector<1x16x128xf32>
    %cst_42 = arith.constant dense<0.000000e+00> : vector<1xf32>
    %175 = vector.multi_reduction <add>, %174, %cst_42 [1, 2] : vector<1x16x128xf32> to vector<1xf32>
    %176 = vector.shape_cast %175 : vector<1xf32> to vector<1x1x1xf32>
    %177 = vector.extract %176[0, 0, 0] : f32 from vector<1x1x1xf32>
    %178 = vector.shape_cast %16 : vector<16x128xf32> to vector<1x16x128xf32>
    %cst_43 = arith.constant dense<0.000000e+00> : vector<1xf32>
    %179 = vector.multi_reduction <add>, %178, %cst_43 [1, 2] : vector<1x16x128xf32> to vector<1xf32>
    %180 = vector.shape_cast %179 : vector<1xf32> to vector<1x1x1xf32>
    %181 = vector.extract %180[0, 0, 0] : f32 from vector<1x1x1xf32>
    %182 = arith.mulf %16, %16 : vector<16x128xf32>
    %183 = vector.shape_cast %182 : vector<16x128xf32> to vector<1x16x128xf32>
    %cst_44 = arith.constant dense<0.000000e+00> : vector<1xf32>
    %184 = vector.multi_reduction <add>, %183, %cst_44 [1, 2] : vector<1x16x128xf32> to vector<1xf32>
    %185 = vector.shape_cast %184 : vector<1xf32> to vector<1x1x1xf32>
    %186 = vector.extract %185[0, 0, 0] : f32 from vector<1x1x1xf32>
    %187 = tpu.iota {dimensions = array<i32: 2>} : vector<1x8x128xi32>
    %188 = tpu.iota {dimensions = array<i32: 1>} : vector<1x8x128xi32>
    %cst_45 = arith.constant 0.000000e+00 : f32
    %189 = vector.broadcast %cst_45 : f32 to vector<1x8x128xf32>
    %c0_i32_46 = arith.constant 0 : i32
    %190 = vector.broadcast %c0_i32_46 : i32 to vector<1x8x128xi32>
    %191 = arith.cmpi eq, %188, %190 : vector<1x8x128xi32>
    %c0_i32_47 = arith.constant 0 : i32
    %192 = vector.broadcast %c0_i32_47 : i32 to vector<1x8x128xi32>
    %193 = arith.cmpi eq, %187, %192 : vector<1x8x128xi32>
    %194 = arith.andi %191, %193 : vector<1x8x128xi1>
    %195 = vector.broadcast %26 : f32 to vector<1x8x128xf32>
    %196 = arith.select %194, %195, %189 : vector<1x8x128xi1>, vector<1x8x128xf32>
    %c0_i32_48 = arith.constant 0 : i32
    %197 = vector.broadcast %c0_i32_48 : i32 to vector<1x8x128xi32>
    %198 = arith.cmpi eq, %188, %197 : vector<1x8x128xi32>
    %c1_i32_49 = arith.constant 1 : i32
    %199 = vector.broadcast %c1_i32_49 : i32 to vector<1x8x128xi32>
    %200 = arith.cmpi eq, %187, %199 : vector<1x8x128xi32>
    %201 = arith.andi %198, %200 : vector<1x8x128xi1>
    %202 = vector.broadcast %65 : f32 to vector<1x8x128xf32>
    %203 = arith.select %201, %202, %196 : vector<1x8x128xi1>, vector<1x8x128xf32>
    %c0_i32_50 = arith.constant 0 : i32
    %204 = vector.broadcast %c0_i32_50 : i32 to vector<1x8x128xi32>
    %205 = arith.cmpi eq, %188, %204 : vector<1x8x128xi32>
    %c2_i32 = arith.constant 2 : i32
    %206 = vector.broadcast %c2_i32 : i32 to vector<1x8x128xi32>
    %207 = arith.cmpi eq, %187, %206 : vector<1x8x128xi32>
    %208 = arith.andi %205, %207 : vector<1x8x128xi1>
    %209 = vector.broadcast %105 : f32 to vector<1x8x128xf32>
    %210 = arith.select %208, %209, %203 : vector<1x8x128xi1>, vector<1x8x128xf32>
    %c0_i32_51 = arith.constant 0 : i32
    %211 = vector.broadcast %c0_i32_51 : i32 to vector<1x8x128xi32>
    %212 = arith.cmpi eq, %188, %211 : vector<1x8x128xi32>
    %c3_i32_52 = arith.constant 3 : i32
    %213 = vector.broadcast %c3_i32_52 : i32 to vector<1x8x128xi32>
    %214 = arith.cmpi eq, %187, %213 : vector<1x8x128xi32>
    %215 = arith.andi %212, %214 : vector<1x8x128xi1>
    %216 = vector.broadcast %155 : f32 to vector<1x8x128xf32>
    %217 = arith.select %215, %216, %210 : vector<1x8x128xi1>, vector<1x8x128xf32>
    %c0_i32_53 = arith.constant 0 : i32
    %218 = vector.broadcast %c0_i32_53 : i32 to vector<1x8x128xi32>
    %219 = arith.cmpi eq, %188, %218 : vector<1x8x128xi32>
    %c4_i32_54 = arith.constant 4 : i32
    %220 = vector.broadcast %c4_i32_54 : i32 to vector<1x8x128xi32>
    %221 = arith.cmpi eq, %187, %220 : vector<1x8x128xi32>
    %222 = arith.andi %219, %221 : vector<1x8x128xi1>
    %223 = vector.broadcast %47 : f32 to vector<1x8x128xf32>
    %224 = arith.select %222, %223, %217 : vector<1x8x128xi1>, vector<1x8x128xf32>
    %c0_i32_55 = arith.constant 0 : i32
    %225 = vector.broadcast %c0_i32_55 : i32 to vector<1x8x128xi32>
    %226 = arith.cmpi eq, %188, %225 : vector<1x8x128xi32>
    %c5_i32 = arith.constant 5 : i32
    %227 = vector.broadcast %c5_i32 : i32 to vector<1x8x128xi32>
    %228 = arith.cmpi eq, %187, %227 : vector<1x8x128xi32>
    %229 = arith.andi %226, %228 : vector<1x8x128xi1>
    %230 = vector.broadcast %87 : f32 to vector<1x8x128xf32>
    %231 = arith.select %229, %230, %224 : vector<1x8x128xi1>, vector<1x8x128xf32>
    %c0_i32_56 = arith.constant 0 : i32
    %232 = vector.broadcast %c0_i32_56 : i32 to vector<1x8x128xi32>
    %233 = arith.cmpi eq, %188, %232 : vector<1x8x128xi32>
    %c6_i32 = arith.constant 6 : i32
    %234 = vector.broadcast %c6_i32 : i32 to vector<1x8x128xi32>
    %235 = arith.cmpi eq, %187, %234 : vector<1x8x128xi32>
    %236 = arith.andi %233, %235 : vector<1x8x128xi1>
    %237 = vector.broadcast %127 : f32 to vector<1x8x128xf32>
    %238 = arith.select %236, %237, %231 : vector<1x8x128xi1>, vector<1x8x128xf32>
    %c0_i32_57 = arith.constant 0 : i32
    %239 = vector.broadcast %c0_i32_57 : i32 to vector<1x8x128xi32>
    %240 = arith.cmpi eq, %188, %239 : vector<1x8x128xi32>
    %c7_i32 = arith.constant 7 : i32
    %241 = vector.broadcast %c7_i32 : i32 to vector<1x8x128xi32>
    %242 = arith.cmpi eq, %187, %241 : vector<1x8x128xi32>
    %243 = arith.andi %240, %242 : vector<1x8x128xi1>
    %244 = vector.broadcast %177 : f32 to vector<1x8x128xf32>
    %245 = arith.select %243, %244, %238 : vector<1x8x128xi1>, vector<1x8x128xf32>
    %c0_i32_58 = arith.constant 0 : i32
    %246 = vector.broadcast %c0_i32_58 : i32 to vector<1x8x128xi32>
    %247 = arith.cmpi eq, %188, %246 : vector<1x8x128xi32>
    %c8_i32_59 = arith.constant 8 : i32
    %248 = vector.broadcast %c8_i32_59 : i32 to vector<1x8x128xi32>
    %249 = arith.cmpi eq, %187, %248 : vector<1x8x128xi32>
    %250 = arith.andi %247, %249 : vector<1x8x128xi1>
    %251 = vector.broadcast %181 : f32 to vector<1x8x128xf32>
    %252 = arith.select %250, %251, %245 : vector<1x8x128xi1>, vector<1x8x128xf32>
    %c0_i32_60 = arith.constant 0 : i32
    %253 = vector.broadcast %c0_i32_60 : i32 to vector<1x8x128xi32>
    %254 = arith.cmpi eq, %188, %253 : vector<1x8x128xi32>
    %c9_i32 = arith.constant 9 : i32
    %255 = vector.broadcast %c9_i32 : i32 to vector<1x8x128xi32>
    %256 = arith.cmpi eq, %187, %255 : vector<1x8x128xi32>
    %257 = arith.andi %254, %256 : vector<1x8x128xi1>
    %258 = vector.broadcast %186 : f32 to vector<1x8x128xf32>
    %259 = arith.select %257, %258, %252 : vector<1x8x128xi1>, vector<1x8x128xf32>
    %c0_61 = arith.constant 0 : index
    %c0_62 = arith.constant 0 : index
    %c0_63 = arith.constant 0 : index
    %260 = vector.load %arg5[%c0_61, %c0_62, %c0_63] : memref<1x8x128xf32, #tpu.memory_space<vmem>>, vector<1x8x128xf32>
    tpu.vector_store %arg5[%c0_61, %c0_62, %c0_63], %259 {strides = array<i32>} : memref<1x8x128xf32, #tpu.memory_space<vmem>>, vector<1x8x128xf32>,
    return
  }
  func.func @transform_0(%arg0: i32) -> (i32, i32) {
    %c0_i32 = arith.constant 0 : i32
    %c0_i32_0 = arith.constant 0 : i32
    return %arg0, %c0_i32 : i32, i32
  }
  func.func @transform_1(%arg0: i32) -> (i32, i32) {
    %c0_i32 = arith.constant 0 : i32
    %c0_i32_0 = arith.constant 0 : i32
    return %arg0, %c0_i32 : i32, i32
  }
  func.func @transform_2(%arg0: i32) -> (i32, i32) {
    %c1_i32 = arith.constant 1 : i32
    %0 = arith.addi %arg0, %c1_i32 : i32
    %c1_i32_0 = arith.constant 1 : i32
    %c0_i32 = arith.constant 0 : i32
    %1 = arith.cmpi eq, %c1_i32_0, %c0_i32 : i32
    %c1_i32_1 = arith.constant 1 : i32
    %2 = arith.select %1, %c1_i32_1, %c1_i32_0 : i32
    %3 = arith.remsi %0, %2 : i32
    %c0_i32_2 = arith.constant 0 : i32
    %4 = arith.cmpi ne, %3, %c0_i32_2 : i32
    %c0_i32_3 = arith.constant 0 : i32
    %5 = arith.cmpi slt, %3, %c0_i32_3 : i32
    %c0_i32_4 = arith.constant 0 : i32
    %6 = arith.cmpi slt, %2, %c0_i32_4 : i32
    %7 = arith.xori %5, %6 : i1
    %8 = arith.andi %7, %4 : i1
    %9 = arith.addi %3, %2 : i32
    %10 = arith.select %8, %9, %3 : i32
    %c1_i32_5 = arith.constant 1 : i32
    %11 = arith.muli %10, %c1_i32_5 : i32
    %c0_i32_6 = arith.constant 0 : i32
    %c0_i32_7 = arith.constant 0 : i32
    return %11, %c0_i32_6 : i32, i32
  }
  func.func @transform_3(%arg0: i32) -> (i32, i32) {
    %c1_i32 = arith.constant 1 : i32
    %0 = arith.addi %arg0, %c1_i32 : i32
    %c1_i32_0 = arith.constant 1 : i32
    %c0_i32 = arith.constant 0 : i32
    %1 = arith.cmpi eq, %c1_i32_0, %c0_i32 : i32
    %c1_i32_1 = arith.constant 1 : i32
    %2 = arith.select %1, %c1_i32_1, %c1_i32_0 : i32
    %3 = arith.remsi %0, %2 : i32
    %c0_i32_2 = arith.constant 0 : i32
    %4 = arith.cmpi ne, %3, %c0_i32_2 : i32
    %c0_i32_3 = arith.constant 0 : i32
    %5 = arith.cmpi slt, %3, %c0_i32_3 : i32
    %c0_i32_4 = arith.constant 0 : i32
    %6 = arith.cmpi slt, %2, %c0_i32_4 : i32
    %7 = arith.xori %5, %6 : i1
    %8 = arith.andi %7, %4 : i1
    %9 = arith.addi %3, %2 : i32
    %10 = arith.select %8, %9, %3 : i32
    %c1_i32_5 = arith.constant 1 : i32
    %11 = arith.muli %10, %c1_i32_5 : i32
    %c0_i32_6 = arith.constant 0 : i32
    %c0_i32_7 = arith.constant 0 : i32
    return %11, %c0_i32_6 : i32, i32
  }
  func.func @transform_4(%arg0: i32) -> (i32, i32, i32) {
    %c0_i32 = arith.constant 0 : i32
    %c0_i32_0 = arith.constant 0 : i32
    %c0_i32_1 = arith.constant 0 : i32
    return %arg0, %c0_i32, %c0_i32_0 : i32, i32, i32
  }
}

</mosaic_0001>

<llo_original>
// kernel: tpu_custom_call.1
$region0: #{tpu_custom_call.1}
  #allocation0 [shape = 'u32[]', space=smem, size = 0x4, offset = 0x4, fixed_abs, tag = 'smem constant byte address 0x4 - core index']
  #allocation1 [shape = 'u32[144,128]{1,0:T(1,128)}', space=vmem, size = 0x12000, scoped, tag = 'internal scratch']
  %s0 = inlined_call_operand.hbm [shape: f32[16,128], index: 0, kind: input, shape index: {}]
  %s1 = inlined_call_operand.hbm [shape: f32[16,128], index: 1, kind: input, shape index: {}]
  %s2 = inlined_call_operand.hbm [shape: f32[16,128], index: 2, kind: input, shape index: {}]
  %s3 = inlined_call_operand.hbm [shape: f32[16,128], index: 3, kind: input, shape index: {}]
  %s4 = inlined_call_operand.hbm [shape: f32[1,8,128], index: 4, kind: output, shape index: {}]
  %s5 = sld [smem:[#allocation0]]
  $region42: #{tpu_custom_call.1} parent=0
    _
  %s7 = ssub.s32 1, %s5
  %s8 = scalar_select 0, %s7, %s5
  $region1: #{tpu_custom_call.1} parent=0
    #allocation2 [shape = 'u8[8192]{0}', space=vmem, size = 0x2000, scoped, tag = 'input window, operand 0, single buffered']
    #allocation3 [shape = 's32[1]{0}', space=sflag, size = 0x4, scoped, tag = 'scoped memory for tpu_custom_call.1']
    #allocation4 [shape = 's32[1]{0}', space=sflag, size = 0x4, scoped, tag = 'scoped memory for tpu_custom_call.1']
    #allocation5 [shape = 'u8[8192]{0}', space=vmem, size = 0x2000, scoped, tag = 'input window, operand 1, single buffered']
    #allocation6 [shape = 's32[1]{0}', space=sflag, size = 0x4, scoped, tag = 'scoped memory for tpu_custom_call.1']
    #allocation7 [shape = 'u8[8192]{0}', space=vmem, size = 0x2000, scoped, tag = 'input window, operand 2, single buffered']
    #allocation8 [shape = 'u8[8192]{0}', space=vmem, size = 0x2000, scoped, tag = 'input window, operand 3, single buffered']
    #allocation9 [shape = 's32[1]{0}', space=sflag, size = 0x4, scoped, tag = 'scoped memory for tpu_custom_call.1']
    #allocation10 [shape = 'u8[4096]{0}', space=vmem, size = 0x1000, scoped, tag = 'output window, operand 0, single buffered']
    %9 = vsyncpa [#allocation3], 0
    %10 = vsyncpa [#allocation6], 0
    %11 = vsyncpa [#allocation9], 0
    %12 = vsyncpa [#allocation4], 0
    // Predicated region
    $region2: #{tpu_custom_call.1} parent=1 // pred_check
      _
    $region3: #{tpu_custom_call.1} parent=1 // pred_check_branch
      %14 = sbr.rel (0) target = $region5
    $region4: #{tpu_custom_call.1} parent=1 // pred_region
      %s16 = ssub.s32 256, 256
      %17 = vsyncadd [#allocation3], %s16
      %s18 = sshll.u32 [#allocation2], 4
      %s19 = int_to_ptr.vmem [resolvable:$true] %s18
      %24 = dma.hbm_to_vmem [thread:$0]  %s0, 256, %s19, [#allocation3], 128, 128, 8
    $region5: #{tpu_custom_call.1} parent=1 // pred_fallthru
      _
    // Predicated region
    $region6: #{tpu_custom_call.1} parent=1 // pred_check
      _
    $region7: #{tpu_custom_call.1} parent=1 // pred_check_branch
      %26 = sbr.rel (0) target = $region9
    $region8: #{tpu_custom_call.1} parent=1 // pred_region
      %s28 = ssub.s32 256, 256
      %29 = vsyncadd [#allocation6], %s28
      %s30 = sshll.u32 [#allocation5], 4
      %s31 = int_to_ptr.vmem [resolvable:$true] %s30
      %36 = dma.hbm_to_vmem [thread:$0]  %s1, 256, %s31, [#allocation6], 128, 128, 8
    $region9: #{tpu_custom_call.1} parent=1 // pred_fallthru
      _
    // Predicated region
    $region10: #{tpu_custom_call.1} parent=1 // pred_check
      _
    $region11: #{tpu_custom_call.1} parent=1 // pred_check_branch
      %38 = sbr.rel (0) target = $region13
    $region12: #{tpu_custom_call.1} parent=1 // pred_region
      %s40 = ssub.s32 256, 256
      %41 = vsyncadd [#allocation6], %s40
      %s42 = sshll.u32 [#allocation7], 4
      %s43 = int_to_ptr.vmem [resolvable:$true] %s42
      %48 = dma.hbm_to_vmem [thread:$0]  %s2, 256, %s43, [#allocation6], 128, 128, 8
    $region13: #{tpu_custom_call.1} parent=1 // pred_fallthru
      _
    // Predicated region
    $region14: #{tpu_custom_call.1} parent=1 // pred_check
      _
    $region15: #{tpu_custom_call.1} parent=1 // pred_check_branch
      %50 = sbr.rel (0) target = $region17
    $region16: #{tpu_custom_call.1} parent=1 // pred_region
      %s52 = ssub.s32 256, 256
      %53 = vsyncadd [#allocation9], %s52
      %s54 = sshll.u32 [#allocation8], 4
      %s55 = int_to_ptr.vmem [resolvable:$true] %s54
      %60 = dma.hbm_to_vmem [thread:$0]  %s3, 256, %s55, [#allocation9], 128, 128, 8
    $region17: #{tpu_custom_call.1} parent=1 // pred_fallthru
      _
    // Predicated region
    $region18: #{tpu_custom_call.1} parent=1 // pred_check
      _
    $region19: #{tpu_custom_call.1} parent=1 // pred_check_branch
      %62 = sbr.rel (0) target = $region21
    $region20: #{tpu_custom_call.1} parent=1 // pred_region
      %63 = dma.done [#allocation3], 256
    $region21: #{tpu_custom_call.1} parent=1 // pred_fallthru
      _
    // Predicated region
    $region22: #{tpu_custom_call.1} parent=1 // pred_check
      _
    $region23: #{tpu_custom_call.1} parent=1 // pred_check_branch
      %65 = sbr.rel (0) target = $region25
    $region24: #{tpu_custom_call.1} parent=1 // pred_region
      %66 = dma.done [#allocation6], 256
    $region25: #{tpu_custom_call.1} parent=1 // pred_fallthru
      _
    // Predicated region
    $region26: #{tpu_custom_call.1} parent=1 // pred_check
      _
    $region27: #{tpu_custom_call.1} parent=1 // pred_check_branch
      %68 = sbr.rel (0) target = $region29
    $region28: #{tpu_custom_call.1} parent=1 // pred_region
      %69 = dma.done [#allocation6], 256
    $region29: #{tpu_custom_call.1} parent=1 // pred_fallthru
      _
    // Predicated region
    $region30: #{tpu_custom_call.1} parent=1 // pred_check
      _
    $region31: #{tpu_custom_call.1} parent=1 // pred_check_branch
      %71 = sbr.rel (0) target = $region33
    $region32: #{tpu_custom_call.1} parent=1 // pred_region
      %72 = dma.done [#allocation9], 256
    $region33: #{tpu_custom_call.1} parent=1 // pred_fallthru
      _
    %s73 = smul.u32 0, 16
    %v74 = vld [vmem:[#allocation2] sm:$0xff]
    %v75 = vld [vmem:[#allocation2 + $0x8] sm:$0xff]
    %v76 = vld [vmem:[#allocation5] sm:$0xff]
    %v77 = vld [vmem:[#allocation5 + $0x8] sm:$0xff]
    %vm78 = vcmp.gt.f32.partialorder %v76, 10.0
    %vm79 = vcmp.gt.f32.partialorder %v77, 10.0
    %v80 = vsel %vm78, 0.0, %v76
    %v81 = vsel %vm79, 0.0, %v77
    %vm82 = vcmp.gt.f32.partialorder %v80, 0.0
    %vm83 = vcmp.gt.f32.partialorder %v81, 0.0
    %v84 = vadd.f32 %v74, 0.001
    %v85 = vadd.f32 %v75, 0.001
    %v86 = vadd.f32 %v80, 0.001
    %v87 = vadd.f32 %v81, 0.001
    %v88 = vrcp.pop %v86
    %v89 = vmul.f32 %v84, %v88
    %v90 = vrcp.pop %v87
    %v91 = vmul.f32 %v85, %v90
    %v92 = vlog2.pop %v89
    %v93 = vmul.f32 %v92, 0.6931472
    %v94 = vlog2.pop %v91
    %v95 = vmul.f32 %v94, 0.6931472
    %v96 = vsel %vm82, %v93, 0.0
    %v97 = vsel %vm83, %v95, 0.0
    %v98 = vsel %vm82, 1, 0
    %v99 = vsel %vm83, 1, 0
    %v100 = vcvt.s32.f32 %v98
    %v101 = vcvt.s32.f32 %v99
    %v102 = vlaneseq
    %v103 = vshrl.u32 %v102, 7
    %v104 = vadd.s32 %v103, 8
    %v105 = vlaneseq
    %v106 = vand.u32 %v105, 127
    %v107 = vstv %s73
    %v108 = vadd.s32 %v103, %v107
    %v109 = vadd.s32 %v104, %v107
    %v110 = vadd.f32 %v100, %v101
    %111 = vadd.xlane.f32.xlu0 %v110
    %v112 = vpop.xlane.xlu0 %111
    %v113 = vrot.slane %v112, 4
    %v114 = vadd.f32 %v112, %v113
    %v115 = vrot.slane %v114, 2
    %v116 = vadd.f32 %v114, %v115
    %v117 = vrot.slane %v116, 1
    %v118 = vadd.f32 %v116, %v117
    %s119 = vtos %v118
    %120 = vrot.lane.b32.xlu0 %v96, 126
    %v121 = vpop.permute.xlu0 %120
    %122 = vrot.lane.b32.xlu0 %v97, 126
    %v123 = vpop.permute.xlu0 %122
    %124 = vrot.lane.b32.xlu0 %v100, 126
    %v125 = vpop.permute.xlu0 %124
    %126 = vrot.lane.b32.xlu0 %v101, 126
    %v127 = vpop.permute.xlu0 %126
    %v128 = vmul.f32 %v100, %v125
    %v129 = vmul.f32 %v101, %v127
    %v130 = vsub.f32 %v96, %v121
    %v131 = vsub.f32 %v97, %v123
    %v132 = vand.u32 2147483647, %v130
    %v133 = vand.u32 2147483647, %v131
    %v134 = vmul.f32 %v132, %v128
    %v135 = vmul.f32 %v133, %v129
    %v136 = vrot.slane %v96, 2
    %v137 = vrot.slane %v97, 2
    %vm138 = vcmp.lt.s32.totalorder %v103, 6
    %v139 = vsel %vm138, %v136, %v137
    %v140 = vsel %vm138, %v137, %v136
    %v141 = vrot.slane %v100, 2
    %v142 = vrot.slane %v101, 2
    %v143 = vsel %vm138, %v141, %v142
    %v144 = vsel %vm138, %v142, %v141
    %vm145 = vcmp.lt.s32.totalorder %v103, 14
    %vm146 = vcmp.lt.s32.totalorder %v104, 14
    %v147 = vmul.f32 %v100, %v143
    %v148 = vmul.f32 %v101, %v144
    %v149 = vsel %vm145, %v147, 0.0
    %v150 = vsel %vm146, %v148, 0.0
    %v151 = vsub.f32 %v96, %v139
    %v152 = vsub.f32 %v97, %v140
    %v153 = vand.u32 2147483647, %v151
    %v154 = vand.u32 2147483647, %v152
    %v155 = vmul.f32 %v153, %v149
    %v156 = vmul.f32 %v154, %v150
    %v157 = vadd.f32 %v134, %v155
    %v158 = vadd.f32 %v135, %v156
    %v159 = vadd.f32 %v157, %v158
    %160 = vadd.xlane.f32.xlu0 %v159
    %v161 = vpop.xlane.xlu0 %160
    %v162 = vrot.slane %v161, 4
    %v163 = vadd.f32 %v161, %v162
    %v164 = vrot.slane %v163, 2
    %v165 = vadd.f32 %v163, %v164
    %v166 = vrot.slane %v165, 1
    %v167 = vadd.f32 %v165, %v166
    %s168 = vtos %v167
    %v169 = vand.u32 %v108, 1
    %v170 = vand.u32 %v109, 1
    %vm171 = vcmp.eq.s32.totalorder %v169, 0
    %vm172 = vcmp.eq.s32.totalorder %v170, 0
    %v173 = vsel %vm171, 1, 0
    %v174 = vsel %vm172, 1, 0
    %v175 = vcvt.s32.f32 %v173
    %v176 = vcvt.s32.f32 %v174
    %v177 = vand.u32 %v106, 1
    %vm178 = vcmp.eq.s32.totalorder %v177, 0
    %v179 = vsel %vm178, 1, 0
    %v180 = vcvt.s32.f32 %v179
    %v181 = vmul.f32 %v175, %v180
    %v182 = vmul.f32 %v176, %v180
    %v183 = vmul.f32 %v100, %v181
    %v184 = vmul.f32 %v101, %v182
    %v185 = vadd.f32 %v183, %v184
    %186 = vadd.xlane.f32.xlu0 %v185
    %v187 = vpop.xlane.xlu0 %186
    %v188 = vrot.slane %v187, 4
    %v189 = vadd.f32 %v187, %v188
    %v190 = vrot.slane %v189, 2
    %v191 = vadd.f32 %v189, %v190
    %v192 = vrot.slane %v191, 1
    %v193 = vadd.f32 %v191, %v192
    %s194 = vtos %v193
    %195 = vrot.lane.b32.xlu0 %v96, 124
    %v196 = vpop.permute.xlu0 %195
    %197 = vrot.lane.b32.xlu0 %v97, 124
    %v198 = vpop.permute.xlu0 %197
    %199 = vrot.lane.b32.xlu0 %v100, 124
    %v200 = vpop.permute.xlu0 %199
    %201 = vrot.lane.b32.xlu0 %v101, 124
    %v202 = vpop.permute.xlu0 %201
    %v203 = vmul.f32 %v100, %v200
    %v204 = vmul.f32 %v101, %v202
    %v205 = vsub.f32 %v96, %v196
    %v206 = vsub.f32 %v97, %v198
    %v207 = vand.u32 2147483647, %v205
    %v208 = vand.u32 2147483647, %v206
    %v209 = vmul.f32 %v207, %v203
    %v210 = vmul.f32 %v208, %v204
    %v211 = vrot.slane %v96, 4
    %v212 = vrot.slane %v97, 4
    %vm213 = vcmp.lt.s32.totalorder %v103, 4
    %v214 = vsel %vm213, %v211, %v212
    %v215 = vsel %vm213, %v212, %v211
    %v216 = vrot.slane %v100, 4
    %v217 = vrot.slane %v101, 4
    %v218 = vsel %vm213, %v216, %v217
    %v219 = vsel %vm213, %v217, %v216
    %vm220 = vcmp.lt.s32.totalorder %v103, 12
    %vm221 = vcmp.lt.s32.totalorder %v104, 12
    %v222 = vmul.f32 %v100, %v218
    %v223 = vmul.f32 %v101, %v219
    %v224 = vsel %vm220, %v222, 0.0
    %v225 = vsel %vm221, %v223, 0.0
    %v226 = vsub.f32 %v96, %v214
    %v227 = vsub.f32 %v97, %v215
    %v228 = vand.u32 2147483647, %v226
    %v229 = vand.u32 2147483647, %v227
    %v230 = vmul.f32 %v228, %v224
    %v231 = vmul.f32 %v229, %v225
    %v232 = vadd.f32 %v209, %v230
    %v233 = vadd.f32 %v210, %v231
    %v234 = vmul.f32 %v232, %v181
    %v235 = vmul.f32 %v233, %v182
    %v236 = vadd.f32 %v234, %v235
    %237 = vadd.xlane.f32.xlu0 %v236
    %v238 = vpop.xlane.xlu0 %237
    %v239 = vrot.slane %v238, 4
    %v240 = vadd.f32 %v238, %v239
    %v241 = vrot.slane %v240, 2
    %v242 = vadd.f32 %v240, %v241
    %v243 = vrot.slane %v242, 1
    %v244 = vadd.f32 %v242, %v243
    %s245 = vtos %v244
    %v246 = vand.u32 %v108, 3
    %v247 = vand.u32 %v109, 3
    %vm248 = vcmp.eq.s32.totalorder %v246, 0
    %vm249 = vcmp.eq.s32.totalorder %v247, 0
    %v250 = vsel %vm248, 1, 0
    %v251 = vsel %vm249, 1, 0
    %v252 = vcvt.s32.f32 %v250
    %v253 = vcvt.s32.f32 %v251
    %v254 = vand.u32 %v106, 3
    %vm255 = vcmp.eq.s32.totalorder %v254, 0
    %v256 = vsel %vm255, 1, 0
    %v257 = vcvt.s32.f32 %v256
    %v258 = vmul.f32 %v252, %v257
    %v259 = vmul.f32 %v253, %v257
    %v260 = vmul.f32 %v100, %v258
    %v261 = vmul.f32 %v101, %v259
    %v262 = vadd.f32 %v260, %v261
    %263 = vadd.xlane.f32.xlu0 %v262
    %v264 = vpop.xlane.xlu0 %263
    %v265 = vrot.slane %v264, 4
    %v266 = vadd.f32 %v264, %v265
    %v267 = vrot.slane %v266, 2
    %v268 = vadd.f32 %v266, %v267
    %v269 = vrot.slane %v268, 1
    %v270 = vadd.f32 %v268, %v269
    %s271 = vtos %v270
    %272 = vrot.lane.b32.xlu0 %v96, 120
    %v273 = vpop.permute.xlu0 %272
    %274 = vrot.lane.b32.xlu0 %v97, 120
    %v275 = vpop.permute.xlu0 %274
    %276 = vrot.lane.b32.xlu0 %v100, 120
    %v277 = vpop.permute.xlu0 %276
    %278 = vrot.lane.b32.xlu0 %v101, 120
    %v279 = vpop.permute.xlu0 %278
    %v280 = vmul.f32 %v100, %v277
    %v281 = vmul.f32 %v101, %v279
    %v282 = vsub.f32 %v96, %v273
    %v283 = vsub.f32 %v97, %v275
    %v284 = vand.u32 2147483647, %v282
    %v285 = vand.u32 2147483647, %v283
    %v286 = vmul.f32 %v284, %v280
    %v287 = vmul.f32 %v285, %v281
    %vm288 = vcmp.lt.s32.totalorder %v103, 8
    %vm289 = vcmp.lt.s32.totalorder %v104, 8
    %v290 = vmul.f32 %v100, %v101
    %v291 = vsel %vm288, %v290, 0.0
    %v292 = vsel %vm289, %v290, 0.0
    %v293 = vsub.f32 %v96, %v97
    %v294 = vsub.f32 %v97, %v96
    %v295 = vand.u32 2147483647, %v293
    %v296 = vand.u32 2147483647, %v294
    %v297 = vmul.f32 %v295, %v291
    %v298 = vmul.f32 %v296, %v292
    %v299 = vadd.f32 %v286, %v297
    %v300 = vadd.f32 %v287, %v298
    %v301 = vmul.f32 %v299, %v258
    %v302 = vmul.f32 %v300, %v259
    %v303 = vadd.f32 %v301, %v302
    %304 = vadd.xlane.f32.xlu0 %v303
    %v305 = vpop.xlane.xlu0 %304
    %v306 = vrot.slane %v305, 4
    %v307 = vadd.f32 %v305, %v306
    %v308 = vrot.slane %v307, 2
    %v309 = vadd.f32 %v307, %v308
    %v310 = vrot.slane %v309, 1
    %v311 = vadd.f32 %v309, %v310
    %s312 = vtos %v311
    %v313 = vcvt.s32.f32 %v108
    %v314 = vcvt.s32.f32 %v109
    %v315 = vmul.f32 %v313, 0.16666667
    %v316 = vmul.f32 %v314, 0.16666667
    %v317 = vadd.f32 %v315, 0.5
    %v318 = vadd.f32 %v316, 0.5
    %v319 = vfloor.f32 %v317
    %v320 = vfloor.f32 %v318
    %v321 = vmul.f32 %v319, 6.0
    %v322 = vmul.f32 %v320, 6.0
    %vm323 = vcmp.eq.f32.partialorder %v321, %v313
    %vm324 = vcmp.eq.f32.partialorder %v322, %v314
    %v325 = vsel %vm323, 1, 0
    %v326 = vsel %vm324, 1, 0
    %v327 = vcvt.s32.f32 %v325
    %v328 = vcvt.s32.f32 %v326
    %v329 = vcvt.s32.f32 %v106
    %v330 = vmul.f32 %v329, 0.16666667
    %v331 = vadd.f32 %v330, 0.5
    %v332 = vfloor.f32 %v331
    %v333 = vmul.f32 %v332, 6.0
    %vm334 = vcmp.eq.f32.partialorder %v333, %v329
    %v335 = vsel %vm334, 1, 0
    %v336 = vcvt.s32.f32 %v335
    %v337 = vmul.f32 %v327, %v336
    %v338 = vmul.f32 %v328, %v336
    %v339 = vmul.f32 %v100, %v337
    %v340 = vmul.f32 %v101, %v338
    %v341 = vadd.f32 %v339, %v340
    %342 = vadd.xlane.f32.xlu0 %v341
    %v343 = vpop.xlane.xlu0 %342
    %v344 = vrot.slane %v343, 4
    %v345 = vadd.f32 %v343, %v344
    %v346 = vrot.slane %v345, 2
    %v347 = vadd.f32 %v345, %v346
    %v348 = vrot.slane %v347, 1
    %v349 = vadd.f32 %v347, %v348
    %s350 = vtos %v349
    %351 = vrot.lane.b32.xlu0 %v96, 116
    %v352 = vpop.permute.xlu0 %351
    %353 = vrot.lane.b32.xlu0 %v97, 116
    %v354 = vpop.permute.xlu0 %353
    %355 = vrot.lane.b32.xlu0 %v100, 116
    %v356 = vpop.permute.xlu0 %355
    %357 = vrot.lane.b32.xlu0 %v101, 116
    %v358 = vpop.permute.xlu0 %357
    %v359 = vmul.f32 %v100, %v356
    %v360 = vmul.f32 %v101, %v358
    %v361 = vsub.f32 %v96, %v352
    %v362 = vsub.f32 %v97, %v354
    %v363 = vand.u32 2147483647, %v361
    %v364 = vand.u32 2147483647, %v362
    %v365 = vmul.f32 %v363, %v359
    %v366 = vmul.f32 %v364, %v360
    %vm367 = vcmp.lt.s32.totalorder %v104, 4
    %v368 = vmul.f32 %v100, %v219
    %v369 = vmul.f32 %v101, %v218
    %v370 = vsel %vm213, %v368, 0.0
    %v371 = vsel %vm367, %v369, 0.0
    %v372 = vsub.f32 %v96, %v215
    %v373 = vsub.f32 %v97, %v214
    %v374 = vand.u32 2147483647, %v372
    %v375 = vand.u32 2147483647, %v373
    %v376 = vmul.f32 %v374, %v370
    %v377 = vmul.f32 %v375, %v371
    %v378 = vadd.f32 %v365, %v376
    %v379 = vadd.f32 %v366, %v377
    %v380 = vmul.f32 %v378, %v337
    %v381 = vmul.f32 %v379, %v338
    %v382 = vadd.f32 %v380, %v381
    %383 = vadd.xlane.f32.xlu0 %v382
    %v384 = vpop.xlane.xlu0 %383
    %v385 = vrot.slane %v384, 4
    %v386 = vadd.f32 %v384, %v385
    %v387 = vrot.slane %v386, 2
    %v388 = vadd.f32 %v386, %v387
    %v389 = vrot.slane %v388, 1
    %v390 = vadd.f32 %v388, %v389
    %s391 = vtos %v390
    %v392 = vadd.f32 %v96, %v97
    %393 = vadd.xlane.f32.xlu0 %v392
    %v394 = vpop.xlane.xlu0 %393
    %v395 = vrot.slane %v394, 4
    %v396 = vadd.f32 %v394, %v395
    %v397 = vrot.slane %v396, 2
    %v398 = vadd.f32 %v396, %v397
    %v399 = vrot.slane %v398, 1
    %v400 = vadd.f32 %v398, %v399
    %s401 = vtos %v400
    %v402 = vmul.f32 %v96, %v96
    %v403 = vmul.f32 %v97, %v97
    %v404 = vadd.f32 %v402, %v403
    %405 = vadd.xlane.f32.xlu0 %v404
    %v406 = vpop.xlane.xlu0 %405
    %v407 = vrot.slane %v406, 4
    %v408 = vadd.f32 %v406, %v407
    %v409 = vrot.slane %v408, 2
    %v410 = vadd.f32 %v408, %v409
    %v411 = vrot.slane %v410, 1
    %v412 = vadd.f32 %v410, %v411
    %s413 = vtos %v412
    %vm414 = vcmp.eq.s32.totalorder %v103, 0
    %vm415 = vcmp.eq.s32.totalorder %v106, 0
    %vm416 = vmand %vm414, %vm415
    %v417 = vstv %s119
    %v418 = vsel %vm416, %v417, 0.0
    %vm419 = vcmp.eq.s32.totalorder %v106, 1
    %vm420 = vmand %vm414, %vm419
    %v421 = vstv %s194
    %v422 = vsel %vm420, %v421, %v418
    %vm423 = vcmp.eq.s32.totalorder %v106, 2
    %vm424 = vmand %vm414, %vm423
    %v425 = vstv %s271
    %v426 = vsel %vm424, %v425, %v422
    %vm427 = vcmp.eq.s32.totalorder %v106, 3
    %vm428 = vmand %vm414, %vm427
    %v429 = vstv %s350
    %v430 = vsel %vm428, %v429, %v426
    %vm431 = vcmp.eq.s32.totalorder %v106, 4
    %vm432 = vmand %vm414, %vm431
    %v433 = vstv %s168
    %v434 = vsel %vm432, %v433, %v430
    %vm435 = vcmp.eq.s32.totalorder %v106, 5
    %vm436 = vmand %vm414, %vm435
    %v437 = vstv %s245
    %v438 = vsel %vm436, %v437, %v434
    %vm439 = vcmp.eq.s32.totalorder %v106, 6
    %vm440 = vmand %vm414, %vm439
    %v441 = vstv %s312
    %v442 = vsel %vm440, %v441, %v438
    %vm443 = vcmp.eq.s32.totalorder %v106, 7
    %vm444 = vmand %vm414, %vm443
    %v445 = vstv %s391
    %v446 = vsel %vm444, %v445, %v442
    %vm447 = vcmp.eq.s32.totalorder %v106, 8
    %vm448 = vmand %vm414, %vm447
    %v449 = vstv %s401
    %v450 = vsel %vm448, %v449, %v446
    %vm451 = vcmp.eq.s32.totalorder %v106, 9
    %vm452 = vmand %vm414, %vm451
    %v453 = vstv %s413
    %v454 = vsel %vm452, %v453, %v450
    %455 = vst [vmem:[#allocation10] sm:$0xff] %v454
    // Predicated region
    $region34: #{tpu_custom_call.1} parent=1 // pred_check
      _
    $region35: #{tpu_custom_call.1} parent=1 // pred_check_branch
      %457 = sbr.rel (0) target = $region37
    $region36: #{tpu_custom_call.1} parent=1 // pred_region
      %s459 = ssub.s32 128, 128
      %460 = vsyncadd [#allocation4], %s459
      %s462 = sshll.u32 [#allocation10], 4
      %s463 = int_to_ptr.vmem [resolvable:$true] %s462
      %465 = dma.vmem_to_hbm [thread:$0]  %s463, 128, %s4, [#allocation4]
    $region37: #{tpu_custom_call.1} parent=1 // pred_fallthru
      _
    // Predicated region
    $region38: #{tpu_custom_call.1} parent=1 // pred_check
      _
    $region39: #{tpu_custom_call.1} parent=1 // pred_check_branch
      %467 = sbr.rel (0) target = $region41
    $region40: #{tpu_custom_call.1} parent=1 // pred_region
      %468 = dma.done [#allocation4], 128
    $region41: #{tpu_custom_call.1} parent=1 // pred_fallthru
      _
    %469 = vsyncpa [#allocation3], 1
    %470 = vsyncpa [#allocation6], 1
    %471 = vsyncpa [#allocation9], 1
    %472 = vsyncpa [#allocation4], 1

</llo_original>
